<compile_context>
chip_gen: v7x
topology: tpu7x:2x2x1
jax: 0.10.0
libtpu: 0.0.40
codegen_flags: <defaults>
</compile_context>

<pallas_src>
import jax
import jax.numpy as jnp
from jax.experimental import pallas as pl
from jax.experimental.pallas import tpu as pltpu


def _round_up(x, m):
    return (x + m - 1) // m * m


def _cdiv(a, b):
    return (a + b - 1) // b


def _linear_sigmoid_kernel(x_ref, w_ref, b_ref, o_ref, acc_ref):
    # x_ref:  (tm, tk)  f32 VMEM   activations
    # w_ref:  (tk, tn)  bf16 VMEM  weight, already (K, N) layout -> no transpose
    # b_ref:  (1,  tn)  f32 VMEM   bias row
    # o_ref:  (tm, tn)  f32 VMEM   output tile
    # acc_ref:(tm, tn)  f32 VMEM   accumulator, resident across the K grid axis
    k = pl.program_id(2)

    @pl.when(k == 0)
    def _():
        # Init accumulator with the bias (saves a VPU add in the epilogue).
        acc_ref[...] = jnp.broadcast_to(
            b_ref[...].astype(jnp.float32), acc_ref.shape
        )

    # bf16 x bf16 on the MXU, f32 accumulation.
    acc_ref[...] += jnp.dot(
        x_ref[...].astype(jnp.bfloat16),
        w_ref[...],
        preferred_element_type=jnp.float32,
    )

    @pl.when(k == pl.num_programs(2) - 1)
    def _():
        # sigmoid -> EUP (logistic), free alongside the MXU epilogue.
        o_ref[...] = jax.nn.sigmoid(acc_ref[...]).astype(o_ref.dtype)


def prepare_linear_params(weight, bias, *, mxu_dtype=jnp.bfloat16, k_align=128):
    """One-time (hoisted) weight/bias preprocessing.

    weight: (N, K) f32, PyTorch nn.Linear layout.
    bias:   (N,)   f32.
    Returns:
      w_t:   (Kp, N) mxu_dtype, K zero-padded to a multiple of k_align and
             transposed so the kernel contracts dim 0 (no in-kernel transpose).
      b_row: (1, N)  f32.
    """
    N, K = weight.shape
    Kp = _round_up(K, k_align)
    w_t = jnp.pad(weight, ((0, 0), (0, Kp - K))).T.astype(mxu_dtype)  # (Kp, N)
    b_row = bias.reshape(1, N).astype(jnp.float32)
    return w_t, b_row


def linear_sigmoid(x, w_t, b_row, *, tm=512, tn=512, tk=1024):
    """y = sigmoid(x @ W.T + b) with W supplied pre-transposed/padded as w_t.

    x:     (M, K)  f32
    w_t:   (Kp, N) bf16 (from prepare_linear_params; Kp = round_up(K, 128))
    b_row: (1, N)  f32
    Returns (M, N) f32.
    """
    M, K = x.shape
    Kp, N = w_t.shape

    # K (the contraction dim) must be exact: w_t's K tail is already zero;
    # pad x along K only when K is not already 128-aligned (tiny copy).
    if K != Kp:
        x = jnp.pad(x, ((0, 0), (0, Kp - K)))

    # Clip tiles to the problem; keep (8,128) alignment (f32 sublane / lane).
    tm = min(tm, _round_up(M, 8))
    tn = min(tn, _round_up(N, 128))
    # Pick the largest 128-multiple <= tk that divides Kp (Kp % 128 == 0).
    tk = max(128, (min(tk, Kp) // 128) * 128)
    while Kp % tk != 0:
        tk -= 128

    # v7x has 2 TensorCores: make sure the "parallel" part of the grid has at
    # least 2 blocks when a tile can be halved without breaking alignment.
    if _cdiv(M, tm) * _cdiv(N, tn) == 1:
        if tn % 256 == 0:
            tn //= 2
        elif tm % 16 == 0:
            tm //= 2

    grid = (_cdiv(M, tm), _cdiv(N, tn), Kp // tk)

    return pl.pallas_call(
        _linear_sigmoid_kernel,
        out_shape=jax.ShapeDtypeStruct((M, N), x.dtype),
        grid_spec=pltpu.PrefetchScalarGridSpec(
            num_scalar_prefetch=0,
            grid=grid,
            in_specs=[
                pl.BlockSpec((tm, tk), lambda i, j, k: (i, k)),   # x
                pl.BlockSpec((tk, tn), lambda i, j, k: (k, j)),   # w (K, N)
                pl.BlockSpec((1, tn), lambda i, j, k: (0, j)),    # bias
            ],
            out_specs=pl.BlockSpec((tm, tn), lambda i, j, k: (i, j)),
            scratch_shapes=[pltpu.VMEM((tm, tn), jnp.float32)],
        ),
        compiler_params=pltpu.CompilerParams(
            dimension_semantics=("parallel", "parallel", "arbitrary"),
        ),
    )(x, w_t, b_row)


if __name__ == "__main__":
    key = jax.random.PRNGKey(0)
    kx, kw, kb, kx2, kw2, kb2 = jax.random.split(key, 6)

    # --- Small config matching the module's forward semantics (linear -> sigmoid).
    # (The reference file declares Linear(1,1) but feeds a (1,8) input, which is
    # inconsistent in PyTorch; we use a consistent small F_in=8, F_out=4, B=2.)
    B, F_in, F_out = 2, 8, 4
    x = jax.random.normal(kx, (B, F_in), dtype=jnp.float32)
    bound = 1.0 / (F_in ** 0.5)
    weight = jax.random.uniform(kw, (F_out, F_in), jnp.float32, -bound, bound)
    bias = jax.random.uniform(kb, (F_out,), jnp.float32, -bound, bound)

    w_t, b_row = prepare_linear_params(weight, bias)       # hoisted, one-time
    out = jax.block_until_ready(linear_sigmoid(x, w_t, b_row))
    ref = jax.nn.sigmoid(x @ weight.T + bias)
    assert out.shape == (B, F_out)
    # bf16 MXU inputs -> loosen tolerance vs. the f32 reference.
    assert jnp.allclose(out, ref, atol=2e-2, rtol=2e-2), float(jnp.max(jnp.abs(out - ref)))

    # --- Larger shape to exercise the tiled grid (partial N tile, v7x M split).
    M2, K2, N2 = 256, 1024, 384
    x2 = jax.random.normal(kx2, (M2, K2), dtype=jnp.float32)
    bound2 = 1.0 / (K2 ** 0.5)
    w2 = jax.random.uniform(kw2, (N2, K2), jnp.float32, -bound2, bound2)
    b2 = jax.random.uniform(kb2, (N2,), jnp.float32, -bound2, bound2)

    w2_t, b2_row = prepare_linear_params(w2, b2)
    out2 = jax.block_until_ready(linear_sigmoid(x2, w2_t, b2_row))
    ref2 = jax.nn.sigmoid(x2 @ w2.T + b2)
    assert out2.shape == (M2, N2)
    assert jnp.allclose(out2, ref2, atol=2e-2, rtol=2e-2), float(jnp.max(jnp.abs(out2 - ref2)))

    print("KERNEL_OK")
</pallas_src>

<mosaic_0001>
module attributes {stable_mosaic.version = 11 : i64} {
  func.func @_linear_sigmoid_kernel(%arg0: i32, %arg1: i32, %arg2: i32, %arg3: memref<8x128xf32, #tpu.memory_space<vmem>>, %arg4: memref<128x128xbf16, #tpu.memory_space<vmem>>, %arg5: memref<1x128xf32, #tpu.memory_space<vmem>>, %arg6: memref<8x128xf32, #tpu.memory_space<vmem>>, %arg7: memref<8x128xf32, #tpu.memory_space<vmem>>) attributes {dimension_semantics = [#tpu.dimension_semantics<parallel>, #tpu.dimension_semantics<parallel>, #tpu.dimension_semantics<arbitrary>], iteration_bounds = array<i64: 1, 1, 1>, scalar_prefetch = 0 : i64, scratch_operands = 1 : i64, tpu.core_type = #tpu.core_type<tc>, window_params = [{transform_indices = @transform_0, window_bounds = array<i64: 8, 128>}, {transform_indices = @transform_1, window_bounds = array<i64: 128, 128>}, {transform_indices = @transform_2, window_bounds = array<i64: 1, 128>}, {transform_indices = @transform_3, window_bounds = array<i64: 8, 128>}]} {
    %c0_i32 = arith.constant 0 : i32
    %0 = arith.cmpi eq, %arg2, %c0_i32 : i32
    %1 = arith.extui %0 : i1 to i32
    %c0_i32_0 = arith.constant 0 : i32
    %2 = arith.cmpi ne, %1, %c0_i32_0 : i32
    scf.if %2 {
      %c0_10 = arith.constant 0 : index
      %c0_11 = arith.constant 0 : index
      %13 = vector.load %arg5[%c0_10, %c0_11] : memref<1x128xf32, #tpu.memory_space<vmem>>, vector<1x128xf32>
      %14 = vector.shape_cast %13 : vector<1x128xf32> to vector<1x128xf32>
      %15 = vector.broadcast %14 : vector<1x128xf32> to vector<8x128xf32>
      %c0_12 = arith.constant 0 : index
      %c0_13 = arith.constant 0 : index
      %16 = vector.load %arg7[%c0_12, %c0_13] : memref<8x128xf32, #tpu.memory_space<vmem>>, vector<8x128xf32>
      tpu.vector_store %arg7[%c0_12, %c0_13], %15 {strides = array<i32>} : memref<8x128xf32, #tpu.memory_space<vmem>>, vector<8x128xf32>,
    } else {
    }
    %c0 = arith.constant 0 : index
    %c0_1 = arith.constant 0 : index
    %3 = vector.load %arg7[%c0, %c0_1] : memref<8x128xf32, #tpu.memory_space<vmem>>, vector<8x128xf32>
    %c0_2 = arith.constant 0 : index
    %c0_3 = arith.constant 0 : index
    %4 = vector.load %arg3[%c0_2, %c0_3] : memref<8x128xf32, #tpu.memory_space<vmem>>, vector<8x128xf32>
    %5 = arith.truncf %4 : vector<8x128xf32> to vector<8x128xbf16>
    %c0_4 = arith.constant 0 : index
    %c0_5 = arith.constant 0 : index
    %6 = vector.load %arg4[%c0_4, %c0_5] : memref<128x128xbf16, #tpu.memory_space<vmem>>, vector<128x128xbf16>
    %cst = arith.constant dense<0.000000e+00> : vector<8x128xf32>
    %7 = tpu.matmul %5, %6, %cst {dimension_numbers = #tpu.dot_dimension_numbers<[1], [0], [0], [1], [0, 0, 1, 1], [], []>} : vector<8x128xbf16>, vector<128x128xbf16>, vector<8x128xf32> -> vector<8x128xf32>
    %8 = arith.addf %3, %7 : vector<8x128xf32>
    %c0_6 = arith.constant 0 : index
    %c0_7 = arith.constant 0 : index
    %9 = vector.load %arg7[%c0_6, %c0_7] : memref<8x128xf32, #tpu.memory_space<vmem>>, vector<8x128xf32>
    tpu.vector_store %arg7[%c0_6, %c0_7], %8 {strides = array<i32>} : memref<8x128xf32, #tpu.memory_space<vmem>>, vector<8x128xf32>,
    %c0_i32_8 = arith.constant 0 : i32
    %10 = arith.cmpi eq, %arg2, %c0_i32_8 : i32
    %11 = arith.extui %10 : i1 to i32
    %c0_i32_9 = arith.constant 0 : i32
    %12 = arith.cmpi ne, %11, %c0_i32_9 : i32
    scf.if %12 {
      %c0_10 = arith.constant 0 : index
      %c0_11 = arith.constant 0 : index
      %13 = vector.load %arg7[%c0_10, %c0_11] : memref<8x128xf32, #tpu.memory_space<vmem>>, vector<8x128xf32>
      %14 = arith.negf %13 : vector<8x128xf32>
      %15 = math.exp %14 : vector<8x128xf32>
      %cst_12 = arith.constant 1.000000e+00 : f32
      %16 = vector.broadcast %cst_12 : f32 to vector<8x128xf32>
      %17 = arith.addf %16, %15 : vector<8x128xf32>
      %18 = arith.divf %16, %17 : vector<8x128xf32>
      %c0_13 = arith.constant 0 : index
      %c0_14 = arith.constant 0 : index
      %19 = vector.load %arg6[%c0_13, %c0_14] : memref<8x128xf32, #tpu.memory_space<vmem>>, vector<8x128xf32>
      tpu.vector_store %arg6[%c0_13, %c0_14], %18 {strides = array<i32>} : memref<8x128xf32, #tpu.memory_space<vmem>>, vector<8x128xf32>,
    } else {
    }
    return
  }
  func.func @transform_0(%arg0: i32, %arg1: i32, %arg2: i32) -> (i32, i32) {
    %c0_i32 = arith.constant 0 : i32
    return %arg0, %arg2 : i32, i32
  }
  func.func @transform_1(%arg0: i32, %arg1: i32, %arg2: i32) -> (i32, i32) {
    %c0_i32 = arith.constant 0 : i32
    return %arg2, %arg1 : i32, i32
  }
  func.func @transform_2(%arg0: i32, %arg1: i32, %arg2: i32) -> (i32, i32) {
    %c0_i32 = arith.constant 0 : i32
    %c0_i32_0 = arith.constant 0 : i32
    return %c0_i32, %arg1 : i32, i32
  }
  func.func @transform_3(%arg0: i32, %arg1: i32, %arg2: i32) -> (i32, i32) {
    %c0_i32 = arith.constant 0 : i32
    return %arg0, %arg1 : i32, i32
  }
}

</mosaic_0001>

<llo_original>
// kernel: tpu_custom_call.1
$region0: #{tpu_custom_call.1}
  #allocation0 [shape = 'u32[]', space=smem, size = 0x4, offset = 0x4, fixed_abs, tag = 'smem constant byte address 0x4 - core index']
  #allocation1 [shape = 'u32[144,128]{1,0:T(1,128)}', space=vmem, size = 0x12000, scoped, tag = 'internal scratch']
  #allocation2 [shape = 'f32[8,128]{1,0:T(8,128)}', space=vmem, size = 0x1000, scoped, tag = 'scratch operand']
  %s0 = inlined_call_operand.vmem [shape: f32[2,128], index: 0, kind: input, shape index: {}]
  %s1 = inlined_call_operand.vmem [shape: bf16[128,4], index: 1, kind: input, shape index: {}]
  %s2 = inlined_call_operand.vmem [shape: f32[1,4], index: 2, kind: input, shape index: {}]
  %s3 = inlined_call_operand.hbm [shape: f32[2,4], index: 3, kind: output, shape index: {}]
  %s4 = sld [smem:[#allocation0]]
  $region30: #{tpu_custom_call.1} parent=0
    _
  %s6 = ssub.s32 1, %s4
  %s7 = scalar_select 0, %s6, %s4
  $region1: #{tpu_custom_call.1} parent=0
    #allocation3 [shape = 'u8[4096]{0}', space=vmem, size = 0x1000, scoped, tag = 'output window, operand 0, single buffered']
    #allocation4 [shape = 's32[1]{0}', space=sflag, size = 0x4, scoped, tag = 'scoped memory for tpu_custom_call.1']
    %8 = vsyncpa [#allocation4], 0
    // Predicated region
    $region2: #{tpu_custom_call.1} parent=1 // pred_check
      _
    $region3: #{tpu_custom_call.1} parent=1 // pred_check_branch
      %10 = sbr.rel (0) target = $region5
    $region4: #{tpu_custom_call.1} parent=1 // pred_region
      _
    $region5: #{tpu_custom_call.1} parent=1 // pred_fallthru
      _
    // Predicated region
    $region6: #{tpu_custom_call.1} parent=1 // pred_check
      _
    $region7: #{tpu_custom_call.1} parent=1 // pred_check_branch
      %12 = sbr.rel (0) target = $region9
    $region8: #{tpu_custom_call.1} parent=1 // pred_region
      _
    $region9: #{tpu_custom_call.1} parent=1 // pred_fallthru
      _
    // Predicated region
    $region10: #{tpu_custom_call.1} parent=1 // pred_check
      _
    $region11: #{tpu_custom_call.1} parent=1 // pred_check_branch
      %14 = sbr.rel (0) target = $region13
    $region12: #{tpu_custom_call.1} parent=1 // pred_region
      _
    $region13: #{tpu_custom_call.1} parent=1 // pred_fallthru
      _
    %p16 = scmp.eq.s32.totalorder 0, 0
    // Predicated region
    $region14: #{tpu_custom_call.1} parent=1 // pred_check
      %p17 = pneg %p16
    $region15: #{tpu_custom_call.1} parent=1 // pred_check_branch
      %19 = sbr.rel (%p17) target = $region17
    $region16: #{tpu_custom_call.1} parent=1 // pred_region
      %v20 = vld [vmem:[%s2] sm:$0x1]
      %v22 = vlaneseq
      %v23 = vshrl.u32 %v22, 7
      %v24 = vsub.s32 0, %v23
      %v25 = vrot.slane %v20, %v24
      %27 = vst [vmem:[#allocation2] sm:$0xff] %v25
    $region17: #{tpu_custom_call.1} parent=1 // pred_fallthru
      _
    %v28 = vld [vmem:[#allocation2] sm:$0xff]
    %v29 = vld [vmem:[%s0] sm:$0xff]
    %v30 = vpack.c.bf16 %v29, %v29
    %v31 = vld [vmem:[%s1] sm:$0xf]
    %v32 = vld [vmem:[%s1 + $0x4] sm:$0xf]
    %v33 = vld [vmem:[%s1 + $0x8] sm:$0xf]
    %v34 = vld [vmem:[%s1 + $0xc] sm:$0xf]
    %v35 = vld [vmem:[%s1 + $0x10] sm:$0xf]
    %v36 = vld [vmem:[%s1 + $0x14] sm:$0xf]
    %v37 = vld [vmem:[%s1 + $0x18] sm:$0xf]
    %v38 = vld [vmem:[%s1 + $0x1c] sm:$0xf]
    %v39 = vld [vmem:[%s1 + $0x20] sm:$0xf]
    %v40 = vld [vmem:[%s1 + $0x24] sm:$0xf]
    %v41 = vld [vmem:[%s1 + $0x28] sm:$0xf]
    %v42 = vld [vmem:[%s1 + $0x2c] sm:$0xf]
    %v43 = vld [vmem:[%s1 + $0x30] sm:$0xf]
    %v44 = vld [vmem:[%s1 + $0x34] sm:$0xf]
    %v45 = vld [vmem:[%s1 + $0x38] sm:$0xf]
    %v46 = vld [vmem:[%s1 + $0x3c] sm:$0xf]
    %v63 = vunpack.c.l.b16 %v31
    %v64 = vunpack.c.l.b16 %v32
    %v65 = vunpack.c.l.b16 %v33
    %v66 = vunpack.c.l.b16 %v34
    %v67 = vunpack.c.l.b16 %v35
    %v68 = vunpack.c.l.b16 %v36
    %v69 = vunpack.c.l.b16 %v37
    %v70 = vunpack.c.l.b16 %v38
    %v71 = vunpack.c.l.b16 %v39
    %v72 = vunpack.c.l.b16 %v40
    %v73 = vunpack.c.l.b16 %v41
    %v74 = vunpack.c.l.b16 %v42
    %v75 = vunpack.c.l.b16 %v43
    %v76 = vunpack.c.l.b16 %v44
    %v77 = vunpack.c.l.b16 %v45
    %v78 = vunpack.c.l.b16 %v46
    %v79 = vpack.c.b16 %v64, %v63
    %v80 = vpack.c.b16 %v66, %v65
    %v81 = vpack.c.b16 %v68, %v67
    %v82 = vpack.c.b16 %v70, %v69
    %v83 = vpack.c.b16 %v72, %v71
    %v84 = vpack.c.b16 %v74, %v73
    %v85 = vpack.c.b16 %v76, %v75
    %v86 = vpack.c.b16 %v78, %v77
    %95 = vmatprep.subr.bf16.mxu0 0
    %96 = vmatpush1.bf16.msra.mxu0 %v79
    %97 = vmatprep.subr.bf16.mxu0 0
    %98 = vmatpush1.bf16.msra.mxu0 %v80
    %99 = vmatprep.subr.bf16.mxu0 0
    %100 = vmatpush1.bf16.msra.mxu0 %v81
    %101 = vmatprep.subr.bf16.mxu0 0
    %102 = vmatpush1.bf16.msra.mxu0 %v82
    %103 = vmatprep.subr.bf16.mxu0 0
    %104 = vmatpush1.bf16.msra.mxu0 %v83
    %105 = vmatprep.subr.bf16.mxu0 0
    %106 = vmatpush1.bf16.msra.mxu0 %v84
    %107 = vmatprep.subr.bf16.mxu0 0
    %108 = vmatpush1.bf16.msra.mxu0 %v85
    %109 = vmatprep.subr.bf16.mxu0 0
    %110 = vmatpush1.bf16.msra.mxu0 %v86
    %111 = vmatprep.subr.bf16.mxu0 0
    %112 = vmatpush1.bf16.msra.mxu0 0
    %113 = vmatprep.subr.bf16.mxu0 0
    %114 = vmatpush1.bf16.msra.mxu0 0
    %115 = vmatprep.subr.bf16.mxu0 0
    %116 = vmatpush1.bf16.msra.mxu0 0
    %117 = vmatprep.subr.bf16.mxu0 0
    %118 = vmatpush1.bf16.msra.mxu0 0
    %119 = vmatprep.subr.bf16.mxu0 0
    %120 = vmatpush1.bf16.msra.mxu0 0
    %121 = vmatprep.subr.bf16.mxu0 0
    %122 = vmatpush1.bf16.msra.mxu0 0
    %123 = vmatprep.subr.bf16.mxu0 0
    %124 = vmatpush1.bf16.msra.mxu0 0
    %125 = vmatprep.subr.bf16.mxu0 0
    %126 = vmatpush1.bf16.msra.mxu0 0
    %127 = vmatprep.mubr.bf16.mxu0 0
    %128 = vmatmul.mubr.bf16.gmra.mrb[0].mxu0 %v30
    %v129 = vpop.f32.mrb[0].mxu0
    %v130 = vadd.f32 0.0, %v129
    %v131 = vpop.f32.mrb[0].mxu0
    %v132 = vpop.f32.mrb[0].mxu0
    %v133 = vpop.f32.mrb[0].mxu0
    %134 = vdwg.mxu0
    %v135 = vadd.f32 %v28, %v130
    %136 = vst [vmem:[#allocation2] sm:$0xff] %v135
    // Predicated region
    $region18: #{tpu_custom_call.1} parent=1 // pred_check
      %p137 = pneg %p16
    $region19: #{tpu_custom_call.1} parent=1 // pred_check_branch
      %139 = sbr.rel (%p137) target = $region21
    $region20: #{tpu_custom_call.1} parent=1 // pred_region
      %v140 = vld [vmem:[#allocation2] sm:$0xff]
      %v141 = vxor.u32 %v140, 2147483648
      %v142 = vmul.f32 %v141, 1.442695
      %v143 = vpow.pop %v142
      %v144 = vadd.f32 %v143, 1.0
      %v145 = vrcp.pop %v144
      %v146 = vmul.f32 1.0, %v145
      %147 = vst [vmem:[#allocation3] sm:$0xff] %v146
    $region21: #{tpu_custom_call.1} parent=1 // pred_fallthru
      _
    // Predicated region
    $region22: #{tpu_custom_call.1} parent=1 // pred_check
      _
    $region23: #{tpu_custom_call.1} parent=1 // pred_check_branch
      %149 = sbr.rel (0) target = $region25
    $region24: #{tpu_custom_call.1} parent=1 // pred_region
      %s151 = ssub.s32 128, 32
      %152 = vsyncadd [#allocation4], %s151
      %s153 = sshll.u32 [#allocation3], 4
      %s154 = int_to_ptr.vmem [resolvable:$true] %s153
      %159 = dma.vmem_to_hbm [thread:$0]  %s154, 32, %s3, [#allocation4], 32, 32, 2
    $region25: #{tpu_custom_call.1} parent=1 // pred_fallthru
      _
    // Predicated region
    $region26: #{tpu_custom_call.1} parent=1 // pred_check
      _
    $region27: #{tpu_custom_call.1} parent=1 // pred_check_branch
      %161 = sbr.rel (0) target = $region29
    $region28: #{tpu_custom_call.1} parent=1 // pred_region
      %162 = dma.done [#allocation4], 128
    $region29: #{tpu_custom_call.1} parent=1 // pred_fallthru
      _
    %163 = vsyncpa [#allocation4], 1

</llo_original>
